<compile_context>
chip_gen: v5e
topology: v5e:2x2
jax: 0.10.0
libtpu: 0.0.40
codegen_flags: <defaults>
</compile_context>

<pallas_src>
import functools

import jax
import jax.numpy as jnp
from jax.experimental import pallas as pl
from jax.experimental.pallas import tpu as pltpu


def mlp_kernel(x_ref, w1_ref, b1_ref, w2_ref, b2_ref, w3t_ref, b3_ref, o_ref):
    # One batch tile per grid step; weights/biases are VMEM-resident blocks.
    x = x_ref[...]
    h = jnp.dot(x, w1_ref[...], preferred_element_type=jnp.float32) + b1_ref[...]
    h = jnp.maximum(h, 0.0)
    h = jnp.dot(h, w2_ref[...], preferred_element_type=jnp.float32) + b2_ref[...]
    h = jnp.maximum(h, 0.0)
    # Final (hidden -> 1) projection: broadcast-multiply + lane reduction.
    # Avoids a 1-lane MXU matmul and keeps the HBM output at 4 B/row; the
    # XLU reduce is free slack in this memory-bound kernel.
    o = jnp.sum(h * w3t_ref[...], axis=-1, keepdims=True) + b3_ref[...]
    o_ref[...] = jnp.maximum(o, 0.0).astype(o_ref.dtype)


def _round_up(n, m):
    return ((n + m - 1) // m) * m


@functools.partial(jax.jit, static_argnames=("tile_b",))
def mlp_forward(x, params, *, tile_b=8192):
    (w1, b1), (w2, b2), (w3, b3) = params
    B, d_in = x.shape
    hidden = w1.shape[1]
    out_features = w3.shape[1]
    # The module's last layer is nn.Linear(input_size, 1); the reduce-based
    # final projection in the kernel assumes a single output feature.
    assert out_features == 1, "kernel specialised for the module's 1-wide head"

    w3t = jnp.transpose(w3)  # (1, hidden) for broadcast against (tile, hidden)

    # --- batch tiling ----------------------------------------------------
    # Big tiles amortize the ~0.35 us/grid-step overhead; keep >= 2 steps
    # whenever the batch allows so v7x's two TensorCores both get work.
    tile_cap = max(8, _round_up(int(tile_b), 8))
    b_pad8 = _round_up(B, 8)
    half = _round_up((b_pad8 + 1) // 2, 8)
    tile = min(tile_cap, max(half, 8))
    Bp = _round_up(B, tile)
    if Bp != B:
        x = jnp.pad(x, ((0, Bp - B), (0, 0)))
    grid = (Bp // tile,)

    # --- VMEM budget ------------------------------------------------------
    # x and output blocks are lane-padded to 128 in VMEM and double-buffered;
    # weights are negligible.  Clamp to a range safe across v5e/v6e/v7x.
    pipeline_bytes = 2 * 2 * tile * 128 * 4
    vmem_limit = min(max(32 * 1024 * 1024, pipeline_bytes + (8 << 20)),
                     100 * 1024 * 1024)

    # --- advisory cost hint (honest shapes, no padded lanes) ---------------
    flops = 2 * Bp * (d_in * hidden + hidden * hidden + hidden * out_features)
    bytes_accessed = 4 * (
        Bp * d_in                              # x read
        + d_in * hidden + hidden               # w1, b1
        + hidden * hidden + hidden             # w2, b2
        + hidden * out_features + out_features  # w3, b3
        + Bp * out_features                    # output write
    )

    out_padded = pl.pallas_call(
        mlp_kernel,
        out_shape=jax.ShapeDtypeStruct((Bp, out_features), jnp.float32),
        grid_spec=pltpu.PrefetchScalarGridSpec(
            num_scalar_prefetch=0,
            grid=grid,
            in_specs=[
                pl.BlockSpec((tile, d_in), lambda i: (i, 0)),   # x tile
                pl.BlockSpec(w1.shape, lambda i: (0, 0)),       # w1 (resident)
                pl.BlockSpec(b1.shape, lambda i: (0, 0)),       # b1
                pl.BlockSpec(w2.shape, lambda i: (0, 0)),       # w2
                pl.BlockSpec(b2.shape, lambda i: (0, 0)),       # b2
                pl.BlockSpec(w3t.shape, lambda i: (0, 0)),      # w3^T (1, hidden)
                pl.BlockSpec(b3.shape, lambda i: (0, 0)),       # b3 (1, 1)
            ],
            out_specs=pl.BlockSpec((tile, out_features), lambda i: (i, 0)),
        ),
        compiler_params=pltpu.CompilerParams(
            dimension_semantics=("parallel",),   # shard batch tiles across TCs (v7x)
            vmem_limit_bytes=vmem_limit,
        ),
        cost_estimate=pl.CostEstimate(
            flops=flops, transcendentals=0, bytes_accessed=bytes_accessed
        ),
    )(x, w1, b1, w2, b2, w3t, b3)

    return out_padded[:B]


def init_params(key, input_size=10):
    # Stack (depth=2): Linear(10, input_size), ReLU,
    #                  Linear(input_size, input_size), ReLU,
    #                  Linear(input_size, 1), ReLU
    # PyTorch-style uniform(-1/sqrt(fan_in), 1/sqrt(fan_in)) init, deterministic.
    def linear(key, fan_in, fan_out):
        kw, kb = jax.random.split(key)
        bound = 1.0 / jnp.sqrt(fan_in)
        w = jax.random.uniform(kw, (fan_in, fan_out), jnp.float32, -bound, bound)
        b = jax.random.uniform(kb, (1, fan_out), jnp.float32, -bound, bound)
        return w, b

    k1, k2, k3 = jax.random.split(key, 3)
    return (
        linear(k1, 10, input_size),
        linear(k2, input_size, input_size),
        linear(k3, input_size, 1),
    )


def mlp_reference(x, params):
    (w1, b1), (w2, b2), (w3, b3) = params
    h = jnp.maximum(x @ w1 + b1, 0.0)
    h = jnp.maximum(h @ w2 + b2, 0.0)
    return jnp.maximum(h @ w3 + b3, 0.0)


if __name__ == "__main__":
    key = jax.random.PRNGKey(0)
    k_params, k_x1, k_x2 = jax.random.split(key, 3)

    input_size = 10
    params = init_params(k_params, input_size=input_size)

    # Small batch (module forward takes (B, 10); nn.Flatten is unused in forward).
    x_small = jax.random.normal(k_x1, (8, 10), dtype=jnp.float32)
    out_small = jax.block_until_ready(mlp_forward(x_small, params))
    ref_small = mlp_reference(x_small, params)
    assert out_small.shape == (8, 1), out_small.shape
    assert jnp.allclose(out_small, ref_small, atol=1e-5, rtol=1e-5)

    # Batch that exercises padding + a multi-step grid (tile=16, 2 grid steps).
    x_ragged = jax.random.normal(k_x2, (20, 10), dtype=jnp.float32)
    out_ragged = jax.block_until_ready(mlp_forward(x_ragged, params))
    ref_ragged = mlp_reference(x_ragged, params)
    assert out_ragged.shape == (20, 1), out_ragged.shape
    assert jnp.allclose(out_ragged, ref_ragged, atol=1e-5, rtol=1e-5)

    print("KERNEL_OK")
</pallas_src>

<mosaic_0001>
module attributes {stable_mosaic.version = 11 : i64} {
  func.func @mlp_kernel(%arg0: i32, %arg1: memref<8x10xf32, #tpu.memory_space<vmem>>, %arg2: memref<10x10xf32, #tpu.memory_space<vmem>>, %arg3: memref<1x10xf32, #tpu.memory_space<vmem>>, %arg4: memref<10x10xf32, #tpu.memory_space<vmem>>, %arg5: memref<1x10xf32, #tpu.memory_space<vmem>>, %arg6: memref<1x10xf32, #tpu.memory_space<vmem>>, %arg7: memref<1x1xf32, #tpu.memory_space<vmem>>, %arg8: memref<8x1xf32, #tpu.memory_space<vmem>>) attributes {dimension_semantics = [#tpu.dimension_semantics<parallel>], iteration_bounds = array<i64: 1>, scalar_prefetch = 0 : i64, scratch_operands = 0 : i64, tpu.core_type = #tpu.core_type<tc>, window_params = [{transform_indices = @transform_0, window_bounds = array<i64: 8, 10>}, {pipeline_mode = #tpu.pipeline_mode<synchronous>, transform_indices = @transform_1, window_bounds = array<i64: 10, 10>}, {pipeline_mode = #tpu.pipeline_mode<synchronous>, transform_indices = @transform_2, window_bounds = array<i64: 1, 10>}, {pipeline_mode = #tpu.pipeline_mode<synchronous>, transform_indices = @transform_3, window_bounds = array<i64: 10, 10>}, {pipeline_mode = #tpu.pipeline_mode<synchronous>, transform_indices = @transform_4, window_bounds = array<i64: 1, 10>}, {pipeline_mode = #tpu.pipeline_mode<synchronous>, transform_indices = @transform_5, window_bounds = array<i64: 1, 10>}, {pipeline_mode = #tpu.pipeline_mode<synchronous>, transform_indices = @transform_6, window_bounds = array<i64: 1, 1>}, {transform_indices = @transform_7, window_bounds = array<i64: 8, 1>}]} {
    %c0 = arith.constant 0 : index
    %c0_0 = arith.constant 0 : index
    %0 = vector.load %arg1[%c0, %c0_0] : memref<8x10xf32, #tpu.memory_space<vmem>>, vector<8x10xf32>
    %c0_1 = arith.constant 0 : index
    %c0_2 = arith.constant 0 : index
    %1 = vector.load %arg2[%c0_1, %c0_2] : memref<10x10xf32, #tpu.memory_space<vmem>>, vector<10x10xf32>
    %cst = arith.constant dense<0.000000e+00> : vector<8x10xf32>
    %2 = tpu.matmul %0, %1, %cst {dimension_numbers = #tpu.dot_dimension_numbers<[1], [0], [0], [1], [0, 0, 1, 1], [], []>} : vector<8x10xf32>, vector<10x10xf32>, vector<8x10xf32> -> vector<8x10xf32>
    %c0_3 = arith.constant 0 : index
    %c0_4 = arith.constant 0 : index
    %3 = vector.load %arg3[%c0_3, %c0_4] : memref<1x10xf32, #tpu.memory_space<vmem>>, vector<1x10xf32>
    %4 = vector.broadcast %3 : vector<1x10xf32> to vector<8x10xf32>
    %5 = arith.addf %2, %4 : vector<8x10xf32>
    %cst_5 = arith.constant 0.000000e+00 : f32
    %6 = vector.broadcast %cst_5 : f32 to vector<8x10xf32>
    %7 = arith.maximumf %5, %6 : vector<8x10xf32>
    %c0_6 = arith.constant 0 : index
    %c0_7 = arith.constant 0 : index
    %8 = vector.load %arg4[%c0_6, %c0_7] : memref<10x10xf32, #tpu.memory_space<vmem>>, vector<10x10xf32>
    %cst_8 = arith.constant dense<0.000000e+00> : vector<8x10xf32>
    %9 = tpu.matmul %7, %8, %cst_8 {dimension_numbers = #tpu.dot_dimension_numbers<[1], [0], [0], [1], [0, 0, 1, 1], [], []>} : vector<8x10xf32>, vector<10x10xf32>, vector<8x10xf32> -> vector<8x10xf32>
    %c0_9 = arith.constant 0 : index
    %c0_10 = arith.constant 0 : index
    %10 = vector.load %arg5[%c0_9, %c0_10] : memref<1x10xf32, #tpu.memory_space<vmem>>, vector<1x10xf32>
    %11 = vector.broadcast %10 : vector<1x10xf32> to vector<8x10xf32>
    %12 = arith.addf %9, %11 : vector<8x10xf32>
    %cst_11 = arith.constant 0.000000e+00 : f32
    %13 = vector.broadcast %cst_11 : f32 to vector<8x10xf32>
    %14 = arith.maximumf %12, %13 : vector<8x10xf32>
    %c0_12 = arith.constant 0 : index
    %c0_13 = arith.constant 0 : index
    %15 = vector.load %arg6[%c0_12, %c0_13] : memref<1x10xf32, #tpu.memory_space<vmem>>, vector<1x10xf32>
    %16 = vector.broadcast %15 : vector<1x10xf32> to vector<8x10xf32>
    %17 = arith.mulf %14, %16 : vector<8x10xf32>
    %cst_14 = arith.constant dense<0.000000e+00> : vector<8xf32>
    %18 = vector.multi_reduction <add>, %17, %cst_14 [1] : vector<8x10xf32> to vector<8xf32>
    %19 = vector.shape_cast %18 : vector<8xf32> to vector<8x1xf32>
    %c0_15 = arith.constant 0 : index
    %c0_16 = arith.constant 0 : index
    %20 = vector.load %arg7[%c0_15, %c0_16] : memref<1x1xf32, #tpu.memory_space<vmem>>, vector<1x1xf32>
    %21 = vector.broadcast %20 : vector<1x1xf32> to vector<8x1xf32>
    %22 = arith.addf %19, %21 : vector<8x1xf32>
    %cst_17 = arith.constant 0.000000e+00 : f32
    %23 = vector.broadcast %cst_17 : f32 to vector<8x1xf32>
    %24 = arith.maximumf %22, %23 : vector<8x1xf32>
    %c0_18 = arith.constant 0 : index
    %c0_19 = arith.constant 0 : index
    %25 = vector.load %arg8[%c0_18, %c0_19] : memref<8x1xf32, #tpu.memory_space<vmem>>, vector<8x1xf32>
    tpu.vector_store %arg8[%c0_18, %c0_19], %24 {strides = array<i32>} : memref<8x1xf32, #tpu.memory_space<vmem>>, vector<8x1xf32>,
    return
  }
  func.func @transform_0(%arg0: i32) -> (i32, i32) {
    %c0_i32 = arith.constant 0 : i32
    %c0_i32_0 = arith.constant 0 : i32
    return %arg0, %c0_i32 : i32, i32
  }
  func.func @transform_1(%arg0: i32) -> (i32, i32) {
    %c0_i32 = arith.constant 0 : i32
    %c0_i32_0 = arith.constant 0 : i32
    %c0_i32_1 = arith.constant 0 : i32
    return %c0_i32, %c0_i32_0 : i32, i32
  }
  func.func @transform_2(%arg0: i32) -> (i32, i32) {
    %c0_i32 = arith.constant 0 : i32
    %c0_i32_0 = arith.constant 0 : i32
    %c0_i32_1 = arith.constant 0 : i32
    return %c0_i32, %c0_i32_0 : i32, i32
  }
  func.func @transform_3(%arg0: i32) -> (i32, i32) {
    %c0_i32 = arith.constant 0 : i32
    %c0_i32_0 = arith.constant 0 : i32
    %c0_i32_1 = arith.constant 0 : i32
    return %c0_i32, %c0_i32_0 : i32, i32
  }
  func.func @transform_4(%arg0: i32) -> (i32, i32) {
    %c0_i32 = arith.constant 0 : i32
    %c0_i32_0 = arith.constant 0 : i32
    %c0_i32_1 = arith.constant 0 : i32
    return %c0_i32, %c0_i32_0 : i32, i32
  }
  func.func @transform_5(%arg0: i32) -> (i32, i32) {
    %c0_i32 = arith.constant 0 : i32
    %c0_i32_0 = arith.constant 0 : i32
    %c0_i32_1 = arith.constant 0 : i32
    return %c0_i32, %c0_i32_0 : i32, i32
  }
  func.func @transform_6(%arg0: i32) -> (i32, i32) {
    %c0_i32 = arith.constant 0 : i32
    %c0_i32_0 = arith.constant 0 : i32
    %c0_i32_1 = arith.constant 0 : i32
    return %c0_i32, %c0_i32_0 : i32, i32
  }
  func.func @transform_7(%arg0: i32) -> (i32, i32) {
    %c0_i32 = arith.constant 0 : i32
    %c0_i32_0 = arith.constant 0 : i32
    return %arg0, %c0_i32 : i32, i32
  }
}

</mosaic_0001>

<llo_original>
// kernel: mlp_forward.1
$region0: #{mlp_forward.1}
  #allocation0 [shape = 'u32[]', space=smem, size = 0x4, offset = 0x4, fixed_abs, tag = 'smem constant byte address 0x4 - core index']
  #allocation1 [shape = 'u32[72,128]{1,0:T(1,128)}', space=vmem, size = 0x9000, scoped, tag = 'internal scratch']
  #allocation2 [shape = 'f32[1,1]{1,0:T(1,128)S(1)}', space=vmem, size = 0x200, scoped, tag = 'scoped memory for mlp_forward.1']
  %s0 = inlined_call_operand.hbm [shape: f32[8,10], index: 0, kind: input, shape index: {}]
  %s1 = inlined_call_operand.hbm [shape: f32[10,10], index: 1, kind: input, shape index: {}]
  %s2 = inlined_call_operand.vmem [shape: f32[1,10], index: 2, kind: input, shape index: {}]
  %s3 = inlined_call_operand.hbm [shape: f32[10,10], index: 3, kind: input, shape index: {}]
  %s4 = inlined_call_operand.vmem [shape: f32[1,10], index: 4, kind: input, shape index: {}]
  %s5 = inlined_call_operand.vmem [shape: f32[1,10], index: 5, kind: input, shape index: {}]
  %s6 = inlined_call_operand.<no memory space> [shape: f32[1,1], index: 6, kind: input, shape index: {}]
  %s7 = inlined_call_operand.vmem [shape: f32[8,1], index: 7, kind: output, shape index: {}]
  %s8 = sld [smem:[#allocation0]]
  $region50: #{mlp_forward.1} parent=0
    _
  %s10 = ssub.s32 1, %s8
  %s11 = scalar_select 0, %s10, %s8
  %v12 = vstv %s6
  %13 = vst [vmem:[#allocation2] sm:$0x1] %v12
  $region1: #{mlp_forward.1} parent=0
    #allocation3 [shape = 'u8[4096]{0}', space=vmem, size = 0x1000, scoped, tag = 'input window, operand 0, single buffered']
    #allocation4 [shape = 's32[1]{0}', space=sflag, size = 0x4, scoped, tag = 'scoped memory for mlp_forward.1']
    #allocation5 [shape = 'u8[8192]{0}', space=vmem, size = 0x2000, scoped, tag = 'input window, operand 1, single buffered']
    #allocation6 [shape = 's32[1]{0}', space=sflag, size = 0x4, scoped, tag = 'scoped memory for mlp_forward.1']
    #allocation7 [shape = 'u8[8192]{0}', space=vmem, size = 0x2000, scoped, tag = 'input window, operand 3, single buffered']
    %14 = vsyncpa [#allocation4], 0
    %15 = vsyncpa [#allocation6], 0
    // Predicated region
    $region2: #{mlp_forward.1} parent=1 // pred_check
      _
    $region3: #{mlp_forward.1} parent=1 // pred_check_branch
      %17 = sbr.rel (0) target = $region5
    $region4: #{mlp_forward.1} parent=1 // pred_region
      %19 = vsyncadd [#allocation4], 0
      %s21 = sshll.u32 %s0, 4
      %s22 = int_to_ptr.hbm [resolvable:$true] %s21
      %s23 = sshll.u32 [#allocation3], 4
      %s24 = int_to_ptr.vmem [resolvable:$true] %s23
      %26 = dma.hbm_to_vmem [thread:$0]  %s22, 128, %s24, [#allocation4]
    $region5: #{mlp_forward.1} parent=1 // pred_fallthru
      _
    // Predicated region
    $region6: #{mlp_forward.1} parent=1 // pred_check
      _
    $region7: #{mlp_forward.1} parent=1 // pred_check_branch
      %28 = sbr.rel (0) target = $region9
    $region8: #{mlp_forward.1} parent=1 // pred_region
      %30 = vsyncadd [#allocation6], 0
      %s31 = sshll.u32 %s1, 4
      %s32 = int_to_ptr.hbm [resolvable:$true] %s31
      %s33 = sshll.u32 [#allocation5], 4
      %s34 = int_to_ptr.vmem [resolvable:$true] %s33
      %39 = dma.hbm_to_vmem [thread:$0]  %s32, 256, %s34, [#allocation6], 128, 128, 8
    $region9: #{mlp_forward.1} parent=1 // pred_fallthru
      _
    // Predicated region
    $region10: #{mlp_forward.1} parent=1 // pred_check
      _
    $region11: #{mlp_forward.1} parent=1 // pred_check_branch
      %41 = sbr.rel (0) target = $region13
    $region12: #{mlp_forward.1} parent=1 // pred_region
      _
    $region13: #{mlp_forward.1} parent=1 // pred_fallthru
      _
    // Predicated region
    $region14: #{mlp_forward.1} parent=1 // pred_check
      _
    $region15: #{mlp_forward.1} parent=1 // pred_check_branch
      %43 = sbr.rel (0) target = $region17
    $region16: #{mlp_forward.1} parent=1 // pred_region
      %45 = vsyncadd [#allocation6], 0
      %s46 = sshll.u32 %s3, 4
      %s47 = int_to_ptr.hbm [resolvable:$true] %s46
      %s48 = sshll.u32 [#allocation7], 4
      %s49 = int_to_ptr.vmem [resolvable:$true] %s48
      %54 = dma.hbm_to_vmem [thread:$0]  %s47, 256, %s49, [#allocation6], 128, 128, 8
    $region17: #{mlp_forward.1} parent=1 // pred_fallthru
      _
    // Predicated region
    $region18: #{mlp_forward.1} parent=1 // pred_check
      _
    $region19: #{mlp_forward.1} parent=1 // pred_check_branch
      %56 = sbr.rel (0) target = $region21
    $region20: #{mlp_forward.1} parent=1 // pred_region
      _
    $region21: #{mlp_forward.1} parent=1 // pred_fallthru
      _
    // Predicated region
    $region22: #{mlp_forward.1} parent=1 // pred_check
      _
    $region23: #{mlp_forward.1} parent=1 // pred_check_branch
      %58 = sbr.rel (0) target = $region25
    $region24: #{mlp_forward.1} parent=1 // pred_region
      _
    $region25: #{mlp_forward.1} parent=1 // pred_fallthru
      _
    // Predicated region
    $region26: #{mlp_forward.1} parent=1 // pred_check
      _
    $region27: #{mlp_forward.1} parent=1 // pred_check_branch
      %60 = sbr.rel (0) target = $region29
    $region28: #{mlp_forward.1} parent=1 // pred_region
      _
    $region29: #{mlp_forward.1} parent=1 // pred_fallthru
      _
    // Predicated region
    $region30: #{mlp_forward.1} parent=1 // pred_check
      _
    $region31: #{mlp_forward.1} parent=1 // pred_check_branch
      %62 = sbr.rel (0) target = $region33
    $region32: #{mlp_forward.1} parent=1 // pred_region
      %64 = dma.done [#allocation4], 128
    $region33: #{mlp_forward.1} parent=1 // pred_fallthru
      _
    // Predicated region
    $region34: #{mlp_forward.1} parent=1 // pred_check
      _
    $region35: #{mlp_forward.1} parent=1 // pred_check_branch
      %66 = sbr.rel (0) target = $region37
    $region36: #{mlp_forward.1} parent=1 // pred_region
      %68 = dma.done [#allocation6], 256
    $region37: #{mlp_forward.1} parent=1 // pred_fallthru
      _
    // Predicated region
    $region38: #{mlp_forward.1} parent=1 // pred_check
      _
    $region39: #{mlp_forward.1} parent=1 // pred_check_branch
      %70 = sbr.rel (0) target = $region41
    $region40: #{mlp_forward.1} parent=1 // pred_region
      %72 = dma.done [#allocation6], 256
    $region41: #{mlp_forward.1} parent=1 // pred_fallthru
      _
    %v73 = vld [vmem:[#allocation3] sm:$0xff]
    %v74 = vld [vmem:[#allocation5] sm:$0xff]
    %v75 = vld [vmem:[#allocation5 + $0x8] sm:$0x3]
    %v76 = vld [vmem:[%s2] sm:$0x1]
    %v78 = vperm.slane %v76, 0
    %vm80 = vcmask 80896
    %v82 = vsel %vm80, %v73, 0
    %vm84 = vcmask 1041408
    %v86 = vsel %vm84, %v75, 0
    %88 = vmatpush.msra.mxu0 0.0
    %89 = vmatpush.msra.mxu0 0.0
    %90 = vmatpush.msra.mxu0 0.0
    %91 = vmatpush.msra.mxu0 0.0
    %92 = vmatpush.msra.mxu0 0.0
    %93 = vmatpush.msra.mxu0 0.0
    %94 = vmatpush.msra.mxu0 0.0
    %95 = vmatpush.msra.mxu0 0.0
    %96 = vmatpush.msra.mxu0 0.0
    %97 = vmatpush.msra.mxu0 0.0
    %98 = vmatpush.msra.mxu0 0.0
    %99 = vmatpush.msra.mxu0 0.0
    %100 = vmatpush.msra.mxu0 0.0
    %101 = vmatpush.msra.mxu0 0.0
    %102 = vmatpush.msra.mxu0 %v86
    %103 = vmatpush.msra.mxu0 %v74
    %104 = vmatmul.f32.gmra.mxu0 %v82
    %v105 = vpop.f32.mrf.mxu0
    %v106 = vadd.f32 %v78, %v105
    %107 = vdwg.mxu0
    %v108 = vmax.f32 %v106, 0.0
    %v109 = vld [vmem:[#allocation7] sm:$0xff]
    %v110 = vld [vmem:[#allocation7 + $0x8] sm:$0x3]
    %v111 = vld [vmem:[%s4] sm:$0x1]
    %v113 = vperm.slane %v111, 0
    %v116 = vsel %vm80, %v108, 0
    %v119 = vsel %vm84, %v110, 0
    %121 = vmatpush.msra.mxu0 0.0
    %122 = vmatpush.msra.mxu0 0.0
    %123 = vmatpush.msra.mxu0 0.0
    %124 = vmatpush.msra.mxu0 0.0
    %125 = vmatpush.msra.mxu0 0.0
    %126 = vmatpush.msra.mxu0 0.0
    %127 = vmatpush.msra.mxu0 0.0
    %128 = vmatpush.msra.mxu0 0.0
    %129 = vmatpush.msra.mxu0 0.0
    %130 = vmatpush.msra.mxu0 0.0
    %131 = vmatpush.msra.mxu0 0.0
    %132 = vmatpush.msra.mxu0 0.0
    %133 = vmatpush.msra.mxu0 0.0
    %134 = vmatpush.msra.mxu0 0.0
    %135 = vmatpush.msra.mxu0 %v119
    %136 = vmatpush.msra.mxu0 %v109
    %137 = vmatmul.f32.gmra.mxu0 %v116
    %v138 = vpop.f32.mrf.mxu0
    %v139 = vadd.f32 %v113, %v138
    %140 = vdwg.mxu0
    %v141 = vmax.f32 %v139, 0.0
    %v142 = vld [vmem:[%s5] sm:$0x1]
    %v144 = vperm.slane %v142, 0
    %v146 = vmul.f32 %v141, %v144
    %v147 = vsel %vm80, %v146, 0.0
    %148 = vadd.xlane.f32.xlu0 %v147
    %v149 = vpop.xlane.xlu0 %148
    %v150 = vld [vmem:[#allocation2] sm:$0x1]
    %v152 = vperm.slane %v150, 0
    %v154 = vadd.f32 %v149, %v152
    %v155 = vmax.f32 %v154, 0.0
    %vm156 = vcmask 7168
    %157 = vst.msk [vmem:[%s7] sm:$0xff] %vm156, %v155
    // Predicated region
    $region42: #{mlp_forward.1} parent=1 // pred_check
      _
    $region43: #{mlp_forward.1} parent=1 // pred_check_branch
      %159 = sbr.rel (0) target = $region45
    $region44: #{mlp_forward.1} parent=1 // pred_region
      _
    $region45: #{mlp_forward.1} parent=1 // pred_fallthru
      _
    // Predicated region
    $region46: #{mlp_forward.1} parent=1 // pred_check
      _
    $region47: #{mlp_forward.1} parent=1 // pred_check_branch
      %161 = sbr.rel (0) target = $region49
    $region48: #{mlp_forward.1} parent=1 // pred_region
      _
    $region49: #{mlp_forward.1} parent=1 // pred_fallthru
      _
    %162 = vsyncpa [#allocation4], 1
    %163 = vsyncpa [#allocation6], 1

</llo_original>
